<compile_context>
chip_gen: v5e
topology: v5e:2x2
jax: 0.10.0
libtpu: 0.0.40
codegen_flags: <defaults>
</compile_context>

<pallas_src>
import functools

import jax
import jax.numpy as jnp
from jax import lax
from jax.experimental import pallas as pl
from jax.experimental.pallas import tpu as pltpu

HIDDEN = 32     # H_net / G_net hidden width
TILE = 128      # states per grid step -> fills the MXU M dimension


# --------------------------------------------------------------------------- #
# Pallas kernel: one grid step processes TILE independent states.
# --------------------------------------------------------------------------- #
def input_hnn_kernel(qp_ref, slab_ref, wout_ref, bcol_ref, out_ref):
    W = slab_ref.shape[1]          # 2*H fused lane width
    H = W // 2

    x = qp_ref[...]                # (TILE, 4)

    # Static row views of the resident weight slab (zero-cost slices).
    w1f = slab_ref[0:4, :]         # (4, W)  [w1.T | wg1.T]
    b1f = slab_ref[4:5, :]         # (1, W)  [b1   | bg1  ]
    b2p = slab_ref[5:6, :]         # (1, W)  [b2   | 0    ]
    w3p = slab_ref[6:7, :]         # (1, W)  [w3   | 0    ]
    w2p = slab_ref[8:8 + W, :]     # (W, W)  [[w2, 0], [0, 0]]

    dn_nt = (((1,), (0,)), ((), ()))    # (M,K) . (K,N)
    dn_rt = (((1,), (1,)), ((), ()))    # (M,K) . (N,K)

    # Fused first layers of H_net and G_net: one matmul, one tanh.
    h1f = jnp.tanh(
        lax.dot_general(x, w1f, dn_nt, preferred_element_type=jnp.float32) + b1f)    # [a1 | ga]
    # H_net layer 2 (zero-padded weight keeps the ga lanes inert -> [a2 | 0]).
    a2p = jnp.tanh(
        lax.dot_general(h1f, w2p, dn_rt, preferred_element_type=jnp.float32) + b2p)
    # Analytic backprop of H.sum() w.r.t. q_p (replaces torch.autograd.grad).
    d2p = (1.0 - a2p * a2p) * w3p                                                    # [d2 | 0]
    g1p = lax.dot_general(d2p, w2p, dn_nt, preferred_element_type=jnp.float32)       # [g1 | 0]
    d1p = (1.0 - h1f * h1f) * g1p                                                    # [d1 | 0]

    # [d1 | ga] in one (TILE, W) tile via a single lane select (no concat/slices).
    lane = lax.broadcasted_iota(jnp.int32, d1p.shape, 1)
    acts = jnp.where(lane < H, d1p, h1f)

    # Fused output projection: dH column gather, -dHdq, u(t)*G, dissipation and
    # bg2*u are folded into wout/bcol by the wrapper -> S_h.T directly, stored
    # as one dense (8, TILE) vreg.
    s_t = lax.dot_general(wout_ref[...], acts, dn_rt, preferred_element_type=jnp.float32)
    out_ref[...] = s_t + bcol_ref[...]


# --------------------------------------------------------------------------- #
# One-time weight packing (at param-creation time, NOT per forward call).
# --------------------------------------------------------------------------- #
def pack_params(params):
    # b3 is intentionally unused: S_h only needs dH/dq_p and a constant bias
    # drops out of the gradient.  Do NOT "fix" this.
    w1, b1, w2, b2, w3, b3 = params["H"]
    wg1, bg1, wg2, bg2 = params["G"]
    Hh = w1.shape[0]
    W = 2 * Hh
    slab = jnp.zeros((8 + W, W), jnp.float32)
    slab = slab.at[0:4, :Hh].set(w1.T.astype(jnp.float32))
    slab = slab.at[0:4, Hh:].set(wg1.T.astype(jnp.float32))
    slab = slab.at[4, :Hh].set(b1.astype(jnp.float32))
    slab = slab.at[4, Hh:].set(bg1.astype(jnp.float32))
    slab = slab.at[5, :Hh].set(b2.astype(jnp.float32))
    slab = slab.at[6, :Hh].set(w3.reshape(-1).astype(jnp.float32))
    slab = slab.at[8:8 + Hh, :Hh].set(w2.astype(jnp.float32))
    return slab


# --------------------------------------------------------------------------- #
# Wrapper
# --------------------------------------------------------------------------- #
# Note: `dissip` static -> toggling it recompiles (mirrors the torch module
# attribute fixed at construction time).
@functools.partial(jax.jit, static_argnames=("dissip",))
def input_hnn_forward(t, x, slab, w1, wg2, bg2, c1, c2, dissip=True):
    N = x.shape[0]
    W = slab.shape[1]
    H = W // 2
    Np = ((N + TILE - 1) // TILE) * TILE
    grid = (Np // TILE,)

    qp = jnp.pad(x[:, :4].astype(jnp.float32), ((0, Np - N), (0, 0)))   # (Np, 4)

    # Per-call (t is a scalar per forward) output projection: folds u=sin(t),
    # dissipation and bg2 into one (8, 2H) weight + (8, 1) bias.
    u = jnp.sin(t).astype(jnp.float32)
    if dissip:
        k1 = (c1[0] ** 2).astype(jnp.float32)
        k2 = (c2[0] ** 2).astype(jnp.float32)
    else:
        k1 = jnp.float32(0.0)
        k2 = jnp.float32(0.0)
    zH = jnp.zeros((H,), jnp.float32)
    z2H = jnp.zeros((W,), jnp.float32)
    wout = jnp.stack([
        jnp.concatenate([w1[:, 1], zH]),                                # dq1dt =  dHdp1
        jnp.concatenate([-w1[:, 0] - k1 * w1[:, 1], u * wg2[1, :]]),    # dp1dt
        jnp.concatenate([w1[:, 3], zH]),                                # dq2dt =  dHdp2
        jnp.concatenate([-w1[:, 2] - k2 * w1[:, 3], u * wg2[3, :]]),    # dp2dt
        z2H, z2H, z2H, z2H,
    ]).astype(jnp.float32)                                              # (8, 2H)
    bcol = jnp.zeros((8,), jnp.float32).at[1].set(u * bg2[1]).at[3].set(u * bg2[3])
    bcol = bcol[:, None]                                                # (8, 1)

    flops = 2 * Np * (4 * W + 2 * W * W + 8 * W)      # per full gridded call
    transc = 2 * Np * W                               # two tanh passes
    bytes_acc = 4 * (Np * 4 + slab.size + wout.size + bcol.size + 8 * Np)

    out_t = pl.pallas_call(
        input_hnn_kernel,
        out_shape=jax.ShapeDtypeStruct((8, Np), jnp.float32),
        grid=grid,
        in_specs=[
            pl.BlockSpec((TILE, 4), lambda i: (i, 0)),     # states walk the grid
            pl.BlockSpec((8 + W, W), lambda i: (0, 0)),    # weight slab: resident in VMEM
            pl.BlockSpec((8, W), lambda i: (0, 0)),        # per-call projection: resident
            pl.BlockSpec((8, 1), lambda i: (0, 0)),        # per-call bias: resident
        ],
        out_specs=pl.BlockSpec((8, TILE), lambda i: (0, i)),   # lane-dense (8,128) store
        compiler_params=pltpu.CompilerParams(dimension_semantics=("parallel",)),
        cost_estimate=pl.CostEstimate(
            flops=flops, transcendentals=transc, bytes_accessed=bytes_acc),
    )(qp, slab, wout, bcol)

    return out_t[:4, :N].T   # (N, 4) = S_h


# --------------------------------------------------------------------------- #
# Pure-JAX reference (uses jax.grad exactly like torch.autograd.grad)
# --------------------------------------------------------------------------- #
def _h_net_ref(qp, w1, b1, w2, b2, w3, b3):
    a1 = jnp.tanh(qp @ w1.T + b1)
    a2 = jnp.tanh(a1 @ w2.T + b2)
    return a2 @ w3.T + b3


def reference_forward(t, x, params, dissip=True):
    q_p = x[:, :4]
    w1, b1, w2, b2, w3, b3 = params["H"]
    wg1, bg1, wg2, bg2 = params["G"]
    dH = jax.grad(lambda q: jnp.sum(_h_net_ref(q, w1, b1, w2, b2, w3, b3)))(q_p)
    dHdq1, dHdp1, dHdq2, dHdp2 = jnp.split(dH, 4, axis=-1)
    G = jnp.tanh(q_p @ wg1.T + bg1) @ wg2.T + bg2
    u = jnp.sin(t)
    c1sq = params["C1_dissip"][0] ** 2
    c2sq = params["C2_dissip"][0] ** 2
    dq1dt = dHdp1
    dq2dt = dHdp2
    dp1dt = -dHdq1 + (G[:, 1] * u)[:, None] - (c1sq * dHdp1 if dissip else 0.0)
    dp2dt = -dHdq2 + (G[:, 3] * u)[:, None] - (c2sq * dHdp2 if dissip else 0.0)
    return jnp.concatenate([dq1dt, dp1dt, dq2dt, dp2dt], axis=-1)


# --------------------------------------------------------------------------- #
# Params / main
# --------------------------------------------------------------------------- #
def make_params(key, hidden=HIDDEN):
    ks = jax.random.split(key, 10)

    def lin(k, fan_out, fan_in):
        s = 1.0 / jnp.sqrt(jnp.float32(fan_in))
        kw, kb = jax.random.split(k)
        w = jax.random.uniform(kw, (fan_out, fan_in), jnp.float32, -s, s)
        b = jax.random.uniform(kb, (fan_out,), jnp.float32, -s, s)
        return w, b

    w1, b1 = lin(ks[0], hidden, 4)
    w2, b2 = lin(ks[1], hidden, hidden)
    w3, b3 = lin(ks[2], 1, hidden)
    wg1, bg1 = lin(ks[3], hidden, 4)
    wg2, bg2 = lin(ks[4], 4, hidden)
    return {
        "H": (w1, b1, w2, b2, w3, b3),
        "G": (wg1, bg1, wg2, bg2),
        "C1_dissip": jnp.sqrt(jnp.array([9e-06], jnp.float32)),
        "C2_dissip": jnp.sqrt(jnp.array([4e-05], jnp.float32)),
    }


if __name__ == "__main__":
    key = jax.random.PRNGKey(0)
    k_x, k_p = jax.random.split(key)

    BATCH = 200   # deliberately not a multiple of TILE: exercises pad + 2-step grid
    x = jax.random.normal(k_x, (BATCH, 6), jnp.float32)   # module only reads x[:, :4]
    t = jnp.float32(0.7)
    params = make_params(k_p)

    slab = pack_params(params)          # packed once, resident across all grid steps
    w1 = params["H"][0]
    wg2, bg2 = params["G"][2], params["G"][3]

    out = input_hnn_forward(t, x, slab, w1, wg2, bg2,
                            params["C1_dissip"], params["C2_dissip"], dissip=True)
    out = jax.block_until_ready(out)

    ref = reference_forward(t, x, params, dissip=True)
    assert out.shape == (BATCH, 4)
    assert jnp.allclose(out, ref, atol=1e-4, rtol=1e-4)

    # TODO(synk): arbitrary user-supplied H_net/G_net architectures would need the
    # analytic backprop and slab layout re-derived; this kernel covers the standard
    # furuta-pendulum MLP choice.
    print("KERNEL_OK")
</pallas_src>

<mosaic_0001>
module attributes {stable_mosaic.version = 11 : i64} {
  func.func @input_hnn_kernel(%arg0: i32, %arg1: memref<128x4xf32, #tpu.memory_space<vmem>>, %arg2: memref<72x64xf32, #tpu.memory_space<vmem>>, %arg3: memref<8x64xf32, #tpu.memory_space<vmem>>, %arg4: memref<8x1xf32, #tpu.memory_space<vmem>>, %arg5: memref<8x128xf32, #tpu.memory_space<vmem>>) attributes {dimension_semantics = [#tpu.dimension_semantics<parallel>], iteration_bounds = array<i64: 2>, scalar_prefetch = 0 : i64, scratch_operands = 0 : i64, tpu.core_type = #tpu.core_type<tc>, window_params = [{transform_indices = @transform_0, window_bounds = array<i64: 128, 4>}, {pipeline_mode = #tpu.pipeline_mode<synchronous>, transform_indices = @transform_1, window_bounds = array<i64: 72, 64>}, {pipeline_mode = #tpu.pipeline_mode<synchronous>, transform_indices = @transform_2, window_bounds = array<i64: 8, 64>}, {pipeline_mode = #tpu.pipeline_mode<synchronous>, transform_indices = @transform_3, window_bounds = array<i64: 8, 1>}, {transform_indices = @transform_4, window_bounds = array<i64: 8, 128>}]} {
    %c0 = arith.constant 0 : index
    %c0_0 = arith.constant 0 : index
    %0 = vector.load %arg1[%c0, %c0_0] : memref<128x4xf32, #tpu.memory_space<vmem>>, vector<128x4xf32>
    %c0_1 = arith.constant 0 : index
    %c0_2 = arith.constant 0 : index
    %1 = vector.load %arg2[%c0_1, %c0_2] : memref<72x64xf32, #tpu.memory_space<vmem>>, vector<4x64xf32>
    %c4 = arith.constant 4 : index
    %c0_3 = arith.constant 0 : index
    %2 = vector.load %arg2[%c4, %c0_3] : memref<72x64xf32, #tpu.memory_space<vmem>>, vector<1x64xf32>
    %c5 = arith.constant 5 : index
    %c0_4 = arith.constant 0 : index
    %3 = vector.load %arg2[%c5, %c0_4] : memref<72x64xf32, #tpu.memory_space<vmem>>, vector<1x64xf32>
    %c6 = arith.constant 6 : index
    %c0_5 = arith.constant 0 : index
    %4 = vector.load %arg2[%c6, %c0_5] : memref<72x64xf32, #tpu.memory_space<vmem>>, vector<1x64xf32>
    %c8 = arith.constant 8 : index
    %c0_6 = arith.constant 0 : index
    %5 = vector.load %arg2[%c8, %c0_6] : memref<72x64xf32, #tpu.memory_space<vmem>>, vector<64x64xf32>
    %cst = arith.constant dense<0.000000e+00> : vector<128x64xf32>
    %6 = tpu.matmul %0, %1, %cst {dimension_numbers = #tpu.dot_dimension_numbers<[1], [0], [0], [1], [0, 0, 1, 1], [], []>} : vector<128x4xf32>, vector<4x64xf32>, vector<128x64xf32> -> vector<128x64xf32>
    %7 = vector.broadcast %2 : vector<1x64xf32> to vector<128x64xf32>
    %8 = arith.addf %6, %7 : vector<128x64xf32>
    %9 = math.tanh %8 : vector<128x64xf32>
    %cst_7 = arith.constant dense<0.000000e+00> : vector<128x64xf32>
    %10 = tpu.matmul %9, %5, %cst_7 {dimension_numbers = #tpu.dot_dimension_numbers<[1], [1], [0], [0], [0, 0, 1, 0], [], []>} : vector<128x64xf32>, vector<64x64xf32>, vector<128x64xf32> -> vector<128x64xf32>
    %11 = vector.broadcast %3 : vector<1x64xf32> to vector<128x64xf32>
    %12 = arith.addf %10, %11 : vector<128x64xf32>
    %13 = math.tanh %12 : vector<128x64xf32>
    %14 = arith.mulf %13, %13 : vector<128x64xf32>
    %cst_8 = arith.constant 1.000000e+00 : f32
    %15 = vector.broadcast %cst_8 : f32 to vector<128x64xf32>
    %16 = arith.subf %15, %14 : vector<128x64xf32>
    %17 = vector.broadcast %4 : vector<1x64xf32> to vector<128x64xf32>
    %18 = arith.mulf %16, %17 : vector<128x64xf32>
    %cst_9 = arith.constant dense<0.000000e+00> : vector<128x64xf32>
    %19 = tpu.matmul %18, %5, %cst_9 {dimension_numbers = #tpu.dot_dimension_numbers<[1], [0], [0], [1], [0, 0, 1, 1], [], []>} : vector<128x64xf32>, vector<64x64xf32>, vector<128x64xf32> -> vector<128x64xf32>
    %20 = arith.mulf %9, %9 : vector<128x64xf32>
    %cst_10 = arith.constant 1.000000e+00 : f32
    %21 = vector.broadcast %cst_10 : f32 to vector<128x64xf32>
    %22 = arith.subf %21, %20 : vector<128x64xf32>
    %23 = arith.mulf %22, %19 : vector<128x64xf32>
    %24 = tpu.iota {dimensions = array<i32: 1>} : vector<128x64xi32>
    %c32_i32 = arith.constant 32 : i32
    %25 = vector.broadcast %c32_i32 : i32 to vector<128x64xi32>
    %26 = arith.cmpi slt, %24, %25 : vector<128x64xi32>
    %27 = arith.select %26, %23, %9 : vector<128x64xi1>, vector<128x64xf32>
    %c0_11 = arith.constant 0 : index
    %c0_12 = arith.constant 0 : index
    %28 = vector.load %arg3[%c0_11, %c0_12] : memref<8x64xf32, #tpu.memory_space<vmem>>, vector<8x64xf32>
    %cst_13 = arith.constant dense<0.000000e+00> : vector<8x128xf32>
    %29 = tpu.matmul %28, %27, %cst_13 {dimension_numbers = #tpu.dot_dimension_numbers<[1], [1], [0], [0], [0, 0, 1, 0], [], []>} : vector<8x64xf32>, vector<128x64xf32>, vector<8x128xf32> -> vector<8x128xf32>
    %c0_14 = arith.constant 0 : index
    %c0_15 = arith.constant 0 : index
    %30 = vector.load %arg4[%c0_14, %c0_15] : memref<8x1xf32, #tpu.memory_space<vmem>>, vector<8x1xf32>
    %31 = vector.broadcast %30 : vector<8x1xf32> to vector<8x128xf32>
    %32 = arith.addf %29, %31 : vector<8x128xf32>
    %c0_16 = arith.constant 0 : index
    %c0_17 = arith.constant 0 : index
    %33 = vector.load %arg5[%c0_16, %c0_17] : memref<8x128xf32, #tpu.memory_space<vmem>>, vector<8x128xf32>
    tpu.vector_store %arg5[%c0_16, %c0_17], %32 {strides = array<i32>} : memref<8x128xf32, #tpu.memory_space<vmem>>, vector<8x128xf32>,
    return
  }
  func.func @transform_0(%arg0: i32) -> (i32, i32) {
    %c0_i32 = arith.constant 0 : i32
    %c0_i32_0 = arith.constant 0 : i32
    return %arg0, %c0_i32 : i32, i32
  }
  func.func @transform_1(%arg0: i32) -> (i32, i32) {
    %c0_i32 = arith.constant 0 : i32
    %c0_i32_0 = arith.constant 0 : i32
    %c0_i32_1 = arith.constant 0 : i32
    return %c0_i32, %c0_i32_0 : i32, i32
  }
  func.func @transform_2(%arg0: i32) -> (i32, i32) {
    %c0_i32 = arith.constant 0 : i32
    %c0_i32_0 = arith.constant 0 : i32
    %c0_i32_1 = arith.constant 0 : i32
    return %c0_i32, %c0_i32_0 : i32, i32
  }
  func.func @transform_3(%arg0: i32) -> (i32, i32) {
    %c0_i32 = arith.constant 0 : i32
    %c0_i32_0 = arith.constant 0 : i32
    %c0_i32_1 = arith.constant 0 : i32
    return %c0_i32, %c0_i32_0 : i32, i32
  }
  func.func @transform_4(%arg0: i32) -> (i32, i32) {
    %c0_i32 = arith.constant 0 : i32
    %c0_i32_0 = arith.constant 0 : i32
    return %c0_i32, %arg0 : i32, i32
  }
}

</mosaic_0001>

<llo_original>
// kernel: input_hnn_forward.1
$region0: #{input_hnn_forward.1}
  #allocation0 [shape = 'u32[]', space=smem, size = 0x4, offset = 0x4, fixed_abs, tag = 'smem constant byte address 0x4 - core index']
  #allocation1 [shape = 'u32[72,128]{1,0:T(1,128)}', space=vmem, size = 0x9000, scoped, tag = 'internal scratch']
  %s0 = inlined_call_operand.vmem [shape: f32[256,4], index: 0, kind: input, shape index: {}]
  %s1 = inlined_call_operand.vmem [shape: f32[72,64], index: 1, kind: input, shape index: {}]
  %s2 = inlined_call_operand.vmem [shape: f32[8,64], index: 2, kind: input, shape index: {}]
  %s3 = inlined_call_operand.vmem [shape: f32[8,1], index: 3, kind: input, shape index: {}]
  %s4 = inlined_call_operand.vmem [shape: f32[8,256], index: 4, kind: output, shape index: {}]
  %s5 = sld [smem:[#allocation0]]
  $region49: #{input_hnn_forward.1} parent=0
    _
  %s7 = ssub.s32 1, %s5
  %s8 = scalar_select 0, %s7, %s5
  loop: start=0, step=1, limit=4
  $region2: #{input_hnn_forward.1} parent=0 // loop_pre_header
    _
  $region3: #{input_hnn_forward.1} parent=0 // loop_header
    %s10 = sphi 0, %s14
    %p11 = scmp.ge.s32.totalorder %s10, 4
    %s20 = sphi 0, %s22
    %s23 = sphi 0, %s20
    %s24 = sphi 0, %s23
    %s40 = sphi 0, %s24
    %s44 = sphi 0, %s44
    %s46 = sphi 0, %s44
    %s47 = sphi 0, %s46
    %s61 = sphi 0, %s47
    %s65 = sphi 0, %s65
    %s67 = sphi 0, %s65
    %s68 = sphi 0, %s67
    %s82 = sphi 0, %s68
    %s86 = sphi 0, %s86
    %s88 = sphi 0, %s86
    %s89 = sphi 0, %s88
    %s103 = sphi 0, %s89
    %s109 = sphi 0, %s111
    %s112 = sphi 0, %s109
    %s113 = sphi 0, %s112
    %s129 = sphi 0, %s113
  $region4: #{input_hnn_forward.1} parent=0 // loop_header_branch
    %13 = sbr.rel (%p11) target = $region8
  $region5: #{input_hnn_forward.1} parent=0 // loop_body
    %s15 = ssub.s32 %s10, 1
    %s16 = ssub.s32 %s10, 2
    %s17 = sadd.s32 %s10, 1
    %s18 = ssub.s32 %s10, %s17
    %p19 = scmp.eq.s32.totalorder %s18, 0
    %s21 = sadd.s32 %s20, 1
    %s22 = scalar_select %p19, %s20, %s21
    %p25 = pneg %p19
    %p26 = scmp.eq.s32.totalorder %s10, 1
    %p27 = por %p25, %p26
    %p28 = scmp.ne.s32.totalorder %s20, %s23
    %p29 = scmp.eq.s32.totalorder %s10, 0
    %p30 = por %p28, %p29
    %p31 = scmp.ne.s32.totalorder %s20, %s23
    %p32 = scmp.eq.s32.totalorder %s15, 1
    %p33 = por %p31, %p32
    %p34 = scmp.ne.s32.totalorder %s23, %s24
    %p35 = scmp.eq.s32.totalorder %s15, 0
    %p36 = por %p34, %p35
    %p37 = scmp.ne.s32.totalorder %s23, %s24
    %p38 = scmp.eq.s32.totalorder %s16, 1
    %p39 = por %p37, %p38
    %p41 = scmp.ne.s32.totalorder %s24, %s40
    %p42 = scmp.eq.s32.totalorder %s16, 0
    %p43 = por %p41, %p42
    %s45 = sadd.s32 %s44, 1
    %p48 = scmp.eq.s32.totalorder %s10, 1
    %p49 = scmp.ne.s32.totalorder %s44, %s46
    %p50 = scmp.eq.s32.totalorder %s10, 0
    %p51 = por %p49, %p50
    %p52 = scmp.ne.s32.totalorder %s44, %s46
    %p53 = scmp.eq.s32.totalorder %s15, 1
    %p54 = por %p52, %p53
    %p55 = scmp.ne.s32.totalorder %s46, %s47
    %p56 = scmp.eq.s32.totalorder %s15, 0
    %p57 = por %p55, %p56
    %p58 = scmp.ne.s32.totalorder %s46, %s47
    %p59 = scmp.eq.s32.totalorder %s16, 1
    %p60 = por %p58, %p59
    %p62 = scmp.ne.s32.totalorder %s47, %s61
    %p63 = scmp.eq.s32.totalorder %s16, 0
    %p64 = por %p62, %p63
    %s66 = sadd.s32 %s65, 1
    %p69 = scmp.eq.s32.totalorder %s10, 1
    %p70 = scmp.ne.s32.totalorder %s65, %s67
    %p71 = scmp.eq.s32.totalorder %s10, 0
    %p72 = por %p70, %p71
    %p73 = scmp.ne.s32.totalorder %s65, %s67
    %p74 = scmp.eq.s32.totalorder %s15, 1
    %p75 = por %p73, %p74
    %p76 = scmp.ne.s32.totalorder %s67, %s68
    %p77 = scmp.eq.s32.totalorder %s15, 0
    %p78 = por %p76, %p77
    %p79 = scmp.ne.s32.totalorder %s67, %s68
    %p80 = scmp.eq.s32.totalorder %s16, 1
    %p81 = por %p79, %p80
    %p83 = scmp.ne.s32.totalorder %s68, %s82
    %p84 = scmp.eq.s32.totalorder %s16, 0
    %p85 = por %p83, %p84
    %s87 = sadd.s32 %s86, 1
    %p90 = scmp.eq.s32.totalorder %s10, 1
    %p91 = scmp.ne.s32.totalorder %s86, %s88
    %p92 = scmp.eq.s32.totalorder %s10, 0
    %p93 = por %p91, %p92
    %p94 = scmp.ne.s32.totalorder %s86, %s88
    %p95 = scmp.eq.s32.totalorder %s15, 1
    %p96 = por %p94, %p95
    %p97 = scmp.ne.s32.totalorder %s88, %s89
    %p98 = scmp.eq.s32.totalorder %s15, 0
    %p99 = por %p97, %p98
    %p100 = scmp.ne.s32.totalorder %s88, %s89
    %p101 = scmp.eq.s32.totalorder %s16, 1
    %p102 = por %p100, %p101
    %p104 = scmp.ne.s32.totalorder %s89, %s103
    %p105 = scmp.eq.s32.totalorder %s16, 0
    %p106 = por %p104, %p105
    %s107 = ssub.s32 %s10, %s17
    %p108 = scmp.eq.s32.totalorder %s107, 0
    %s110 = sadd.s32 %s109, 1
    %s111 = scalar_select %p108, %s109, %s110
    %p114 = pneg %p108
    %p115 = scmp.eq.s32.totalorder %s10, 1
    %p116 = por %p114, %p115
    %p117 = scmp.ne.s32.totalorder %s109, %s112
    %p118 = scmp.eq.s32.totalorder %s10, 0
    %p119 = por %p117, %p118
    %p120 = scmp.ne.s32.totalorder %s109, %s112
    %p121 = scmp.eq.s32.totalorder %s15, 1
    %p122 = por %p120, %p121
    %p123 = scmp.ne.s32.totalorder %s112, %s113
    %p124 = scmp.eq.s32.totalorder %s15, 0
    %p125 = por %p123, %p124
    %p126 = scmp.ne.s32.totalorder %s112, %s113
    %p127 = scmp.eq.s32.totalorder %s16, 1
    %p128 = por %p126, %p127
    %p130 = scmp.ne.s32.totalorder %s113, %s129
    %p131 = scmp.eq.s32.totalorder %s16, 0
    %p132 = por %p130, %p131
    %p133 = scmp.le.s32.totalorder 1, %s10
    %p134 = scmp.lt.s32.totalorder %s10, 3
    %p135 = pnand %p133, %p134
    %p136 = pneg %p135
    // Predicated region
    $region9: #{input_hnn_forward.1} parent=5 // pred_check
      _
    $region10: #{input_hnn_forward.1} parent=5 // pred_check_branch
      %138 = sbr.rel (%p135) target = $region12
    $region11: #{input_hnn_forward.1} parent=5 // pred_region
      %s139 = ssub.s32 %s10, 1
      // Predicated region
      $region13: #{input_hnn_forward.1} parent=11 // pred_check
        %p140 = pneg %p57
      $region14: #{input_hnn_forward.1} parent=11 // pred_check_branch
        %142 = sbr.rel (%p140) target = $region16
      $region15: #{input_hnn_forward.1} parent=11 // pred_region
        _
      $region16: #{input_hnn_forward.1} parent=11 // pred_fallthru
        _
      // Predicated region
      $region17: #{input_hnn_forward.1} parent=11 // pred_check
        %p143 = pneg %p78
      $region18: #{input_hnn_forward.1} parent=11 // pred_check_branch
        %145 = sbr.rel (%p143) target = $region20
      $region19: #{input_hnn_forward.1} parent=11 // pred_region
        _
      $region20: #{input_hnn_forward.1} parent=11 // pred_fallthru
        _
      // Predicated region
      $region21: #{input_hnn_forward.1} parent=11 // pred_check
        %p146 = pneg %p99
      $region22: #{input_hnn_forward.1} parent=11 // pred_check_branch
        %148 = sbr.rel (%p146) target = $region24
      $region23: #{input_hnn_forward.1} parent=11 // pred_region
        _
      $region24: #{input_hnn_forward.1} parent=11 // pred_fallthru
        _
    $region12: #{input_hnn_forward.1} parent=5 // pred_fallthru
      _
    %p149 = scmp.lt.s32.totalorder %s10, 2
    // Predicated region
    $region25: #{input_hnn_forward.1} parent=5 // pred_check
      %p150 = pneg %p149
    $region26: #{input_hnn_forward.1} parent=5 // pred_check_branch
      %152 = sbr.rel (%p150) target = $region28
    $region27: #{input_hnn_forward.1} parent=5 // pred_region
      // Predicated region
      $region29: #{input_hnn_forward.1} parent=27 // pred_check
        %p153 = pneg %p30
      $region30: #{input_hnn_forward.1} parent=27 // pred_check_branch
        %155 = sbr.rel (%p153) target = $region32
      $region31: #{input_hnn_forward.1} parent=27 // pred_region
        %s156 = smul.u32 16, %s10
        %p157 = scmp.lt.s32.totalorder %s156, 31
        %s158 = scalar_select %p157, %s156, 31
        %s159 = smul.addr %s158, 8
        %s160 = scalar_lea.vmem %s0, %s159
        %s161 = smul.u32 16, %s10
      $region32: #{input_hnn_forward.1} parent=27 // pred_fallthru
        _
    $region28: #{input_hnn_forward.1} parent=5 // pred_fallthru
      _
    %p162 = scmp.le.s32.totalorder 1, %s10
    %p163 = scmp.lt.s32.totalorder %s10, 3
    %p164 = pnand %p162, %p163
    %p165 = pneg %p164
    // Predicated region
    $region33: #{input_hnn_forward.1} parent=5 // pred_check
      _
    $region34: #{input_hnn_forward.1} parent=5 // pred_check_branch
      %167 = sbr.rel (%p164) target = $region36
    $region35: #{input_hnn_forward.1} parent=5 // pred_region
      %s168 = ssub.s32 %s10, 1
      %s169 = smul.u32 16, %s15
      %p170 = scmp.lt.s32.totalorder %s169, 31
      %s171 = scalar_select %p170, %s169, 31
      %s172 = smul.addr %s171, 8
      %s173 = scalar_lea.vmem %s0, %s172
      %p174 = pneg %p36
      %p175 = pneg %p33
      %p176 = pneg %p57
      %p177 = pneg %p54
      %p178 = pneg %p78
      %p179 = pneg %p75
      %p180 = pneg %p99
      %p181 = pneg %p96
      %p182 = pneg %p125
      %p183 = pneg %p122
      %p184 = scmp.lt.s32.totalorder %s15, 1
      %s185 = scalar_select %p184, %s15, 1
      %s186 = smul.addr %s185, 8
      %s187 = scalar_lea.vmem %s4, %s186
      %s188 = smul.u32 16, %s15
      %p189 = scmp.lt.s32.totalorder %s188, 31
      %s190 = scalar_select %p189, %s188, 31
      %s191 = smul.addr %s190, 8
      %s192 = scalar_lea.vmem %s0, %s191
      %s193 = smul.u32 16, %s15
      %p194 = scmp.lt.s32.totalorder %s15, 1
      %s195 = scalar_select %p194, %s15, 1
      %s196 = smul.addr %s195, 8
      %s197 = scalar_lea.vmem %s4, %s196
      %v198 = vld [vmem:[%s192] sm:$0xff]
      %v199 = vld [vmem:[%s192 + $0x8] sm:$0xff]
      %v200 = vld [vmem:[%s192 + $0x10] sm:$0xff]
      %v201 = vld [vmem:[%s192 + $0x18] sm:$0xff]
      %v202 = vld [vmem:[%s192 + $0x20] sm:$0xff]
      %v203 = vld [vmem:[%s192 + $0x28] sm:$0xff]
      %v204 = vld [vmem:[%s192 + $0x30] sm:$0xff]
      %v205 = vld [vmem:[%s192 + $0x38] sm:$0xff]
      %v206 = vld [vmem:[%s192 + $0x40] sm:$0xff]
      %v207 = vld [vmem:[%s192 + $0x48] sm:$0xff]
      %v208 = vld [vmem:[%s192 + $0x50] sm:$0xff]
      %v209 = vld [vmem:[%s192 + $0x58] sm:$0xff]
      %v210 = vld [vmem:[%s192 + $0x60] sm:$0xff]
      %v211 = vld [vmem:[%s192 + $0x68] sm:$0xff]
      %v212 = vld [vmem:[%s192 + $0x70] sm:$0xff]
      %v213 = vld [vmem:[%s192 + $0x78] sm:$0xff]
      %v214 = vld [vmem:[%s1] sm:$0xf]
      %v215 = vld [vmem:[%s1 + $0x4] sm:$0x1]
      %v216 = vld [vmem:[%s1 + $0x5] sm:$0x1]
      %v217 = vld [vmem:[%s1 + $0x6] sm:$0x1]
      %v218 = vld [vmem:[%s1 + $0x8] sm:$0xff]
      %v219 = vld [vmem:[%s1 + $0x10] sm:$0xff]
      %v220 = vld [vmem:[%s1 + $0x18] sm:$0xff]
      %v221 = vld [vmem:[%s1 + $0x20] sm:$0xff]
      %v222 = vld [vmem:[%s1 + $0x28] sm:$0xff]
      %v223 = vld [vmem:[%s1 + $0x30] sm:$0xff]
      %v224 = vld [vmem:[%s1 + $0x38] sm:$0xff]
      %v225 = vld [vmem:[%s1 + $0x40] sm:$0xff]
      %v226 = vperm.slane %v215, 0
      %vm227 = vcmask 31744
      %v229 = vsel %vm227, %v198, 0
      %v232 = vsel %vm227, %v199, 0
      %v235 = vsel %vm227, %v200, 0
      %v238 = vsel %vm227, %v201, 0
      %v241 = vsel %vm227, %v202, 0
      %v244 = vsel %vm227, %v203, 0
      %v247 = vsel %vm227, %v204, 0
      %v250 = vsel %vm227, %v205, 0
      %v253 = vsel %vm227, %v206, 0
      %v256 = vsel %vm227, %v207, 0
      %v259 = vsel %vm227, %v208, 0
      %v262 = vsel %vm227, %v209, 0
      %v265 = vsel %vm227, %v210, 0
      %v268 = vsel %vm227, %v211, 0
      %v271 = vsel %vm227, %v212, 0
      %v274 = vsel %vm227, %v213, 0
      %vm276 = vcmask 1043456
      %v278 = vsel %vm276, %v214, 0
      %280 = vmatpush.msra.mxu0 0.0
      %281 = vmatpush.msra.mxu0 0.0
      %282 = vmatpush.msra.mxu0 0.0
      %283 = vmatpush.msra.mxu0 0.0
      %284 = vmatpush.msra.mxu0 0.0
      %285 = vmatpush.msra.mxu0 0.0
      %286 = vmatpush.msra.mxu0 0.0
      %287 = vmatpush.msra.mxu0 0.0
      %288 = vmatpush.msra.mxu0 0.0
      %289 = vmatpush.msra.mxu0 0.0
      %290 = vmatpush.msra.mxu0 0.0
      %291 = vmatpush.msra.mxu0 0.0
      %292 = vmatpush.msra.mxu0 0.0
      %293 = vmatpush.msra.mxu0 0.0
      %294 = vmatpush.msra.mxu0 0.0
      %295 = vmatpush.msra.mxu0 %v278
      %296 = vmatmul.f32.gmra.mxu0 %v229
      %v297 = vpop.f32.mrf.mxu0
      %v298 = vadd.f32 %v226, %v297
      %299 = vmatmul.f32.gmra.mxu0 %v232
      %v300 = vpop.f32.mrf.mxu0
      %v301 = vadd.f32 %v226, %v300
      %302 = vmatmul.f32.gmra.mxu0 %v235
      %v303 = vpop.f32.mrf.mxu0
      %v304 = vadd.f32 %v226, %v303
      %305 = vmatmul.f32.gmra.mxu0 %v238
      %v306 = vpop.f32.mrf.mxu0
      %v307 = vadd.f32 %v226, %v306
      %308 = vmatmul.f32.gmra.mxu0 %v241
      %v309 = vpop.f32.mrf.mxu0
      %v310 = vadd.f32 %v226, %v309
      %311 = vmatmul.f32.gmra.mxu0 %v244
      %v312 = vpop.f32.mrf.mxu0
      %v313 = vadd.f32 %v226, %v312
      %314 = vmatmul.f32.gmra.mxu0 %v247
      %v315 = vpop.f32.mrf.mxu0
      %v316 = vadd.f32 %v226, %v315
      %317 = vmatmul.f32.gmra.mxu0 %v250
      %v318 = vpop.f32.mrf.mxu0
      %v319 = vadd.f32 %v226, %v318
      %320 = vmatmul.f32.gmra.mxu0 %v253
      %v321 = vpop.f32.mrf.mxu0
      %v322 = vadd.f32 %v226, %v321
      %323 = vmatmul.f32.gmra.mxu0 %v256
      %v324 = vpop.f32.mrf.mxu0
      %v325 = vadd.f32 %v226, %v324
      %326 = vmatmul.f32.gmra.mxu0 %v259
      %v327 = vpop.f32.mrf.mxu0
      %v328 = vadd.f32 %v226, %v327
      %329 = vmatmul.f32.gmra.mxu0 %v262
      %v330 = vpop.f32.mrf.mxu0
      %v331 = vadd.f32 %v226, %v330
      %332 = vmatmul.f32.gmra.mxu0 %v265
      %v333 = vpop.f32.mrf.mxu0
      %v334 = vadd.f32 %v226, %v333
      %335 = vmatmul.f32.gmra.mxu0 %v268
      %v336 = vpop.f32.mrf.mxu0
      %v337 = vadd.f32 %v226, %v336
      %338 = vmatmul.f32.gmra.mxu0 %v271
      %v339 = vpop.f32.mrf.mxu0
      %v340 = vadd.f32 %v226, %v339
      %341 = vmatmul.f32.gmra.mxu0 %v274
      %v342 = vpop.f32.mrf.mxu0
      %v343 = vadd.f32 %v226, %v342
      %344 = vdwg.mxu0
      %v345 = vtanh.pop %v298
      %v346 = vtanh.pop %v301
      %v347 = vtanh.pop %v304
      %v348 = vtanh.pop %v307
      %v349 = vtanh.pop %v310
      %v350 = vtanh.pop %v313
      %v351 = vtanh.pop %v316
      %v352 = vtanh.pop %v319
      %v353 = vtanh.pop %v322
      %v354 = vtanh.pop %v325
      %v355 = vtanh.pop %v328
      %v356 = vtanh.pop %v331
      %v357 = vtanh.pop %v334
      %v358 = vtanh.pop %v337
      %v359 = vtanh.pop %v340
      %v360 = vtanh.pop %v343
      %v361 = vperm.slane %v216, 0
      %vm362 = vcmask 523264
      %v364 = vsel %vm362, %v345, 0
      %v367 = vsel %vm362, %v346, 0
      %v370 = vsel %vm362, %v347, 0
      %v373 = vsel %vm362, %v348, 0
      %v376 = vsel %vm362, %v349, 0
      %v379 = vsel %vm362, %v350, 0
      %v382 = vsel %vm362, %v351, 0
      %v385 = vsel %vm362, %v352, 0
      %v388 = vsel %vm362, %v353, 0
      %v391 = vsel %vm362, %v354, 0
      %v394 = vsel %vm362, %v355, 0
      %v397 = vsel %vm362, %v356, 0
      %v400 = vsel %vm362, %v357, 0
      %v403 = vsel %vm362, %v358, 0
      %v406 = vsel %vm362, %v359, 0
      %v409 = vsel %vm362, %v360, 0
      %v412 = vsel %vm362, %v218, 0
      %v415 = vsel %vm362, %v219, 0
      %v418 = vsel %vm362, %v220, 0
      %v421 = vsel %vm362, %v221, 0
      %v424 = vsel %vm362, %v222, 0
      %v427 = vsel %vm362, %v223, 0
      %v430 = vsel %vm362, %v224, 0
      %v433 = vsel %vm362, %v225, 0
      %435 = vmatpush.xpose.msra.mxu0 0.0
      %436 = vmatpush.xpose.msra.mxu0 0.0
      %437 = vmatpush.xpose.msra.mxu0 0.0
      %438 = vmatpush.xpose.msra.mxu0 0.0
      %439 = vmatpush.xpose.msra.mxu0 0.0
      %440 = vmatpush.xpose.msra.mxu0 0.0
      %441 = vmatpush.xpose.msra.mxu0 0.0
      %442 = vmatpush.xpose.msra.mxu0 0.0
      %443 = vmatpush.xpose.msra.mxu0 %v433
      %444 = vmatpush.xpose.msra.mxu0 %v430
      %445 = vmatpush.xpose.msra.mxu0 %v427
      %446 = vmatpush.xpose.msra.mxu0 %v424
      %447 = vmatpush.xpose.msra.mxu0 %v421
      %448 = vmatpush.xpose.msra.mxu0 %v418
      %449 = vmatpush.xpose.msra.mxu0 %v415
      %450 = vmatpush.xpose.msra.mxu0 %v412
      %451 = vmatmul.f32.gmra.mxu0 %v364
      %v452 = vpop.f32.mrf.mxu0
      %v453 = vadd.f32 %v361, %v452
      %454 = vmatmul.f32.gmra.mxu0 %v367
      %v455 = vpop.f32.mrf.mxu0
      %v456 = vadd.f32 %v361, %v455
      %457 = vmatmul.f32.gmra.mxu0 %v370
      %v458 = vpop.f32.mrf.mxu0
      %v459 = vadd.f32 %v361, %v458
      %460 = vmatmul.f32.gmra.mxu0 %v373
      %v461 = vpop.f32.mrf.mxu0
      %v462 = vadd.f32 %v361, %v461
      %463 = vmatmul.f32.gmra.mxu0 %v376
      %v464 = vpop.f32.mrf.mxu0
      %v465 = vadd.f32 %v361, %v464
      %466 = vmatmul.f32.gmra.mxu0 %v379
      %v467 = vpop.f32.mrf.mxu0
      %v468 = vadd.f32 %v361, %v467
      %469 = vmatmul.f32.gmra.mxu0 %v382
      %v470 = vpop.f32.mrf.mxu0
      %v471 = vadd.f32 %v361, %v470
      %472 = vmatmul.f32.gmra.mxu0 %v385
      %v473 = vpop.f32.mrf.mxu0
      %v474 = vadd.f32 %v361, %v473
      %475 = vmatmul.f32.gmra.mxu0 %v388
      %v476 = vpop.f32.mrf.mxu0
      %v477 = vadd.f32 %v361, %v476
      %478 = vmatmul.f32.gmra.mxu0 %v391
      %v479 = vpop.f32.mrf.mxu0
      %v480 = vadd.f32 %v361, %v479
      %481 = vmatmul.f32.gmra.mxu0 %v394
      %v482 = vpop.f32.mrf.mxu0
      %v483 = vadd.f32 %v361, %v482
      %484 = vmatmul.f32.gmra.mxu0 %v397
      %v485 = vpop.f32.mrf.mxu0
      %v486 = vadd.f32 %v361, %v485
      %487 = vmatmul.f32.gmra.mxu0 %v400
      %v488 = vpop.f32.mrf.mxu0
      %v489 = vadd.f32 %v361, %v488
      %490 = vmatmul.f32.gmra.mxu0 %v403
      %v491 = vpop.f32.mrf.mxu0
      %v492 = vadd.f32 %v361, %v491
      %493 = vmatmul.f32.gmra.mxu0 %v406
      %v494 = vpop.f32.mrf.mxu0
      %v495 = vadd.f32 %v361, %v494
      %496 = vmatmul.f32.gmra.mxu0 %v409
      %v497 = vpop.f32.mrf.mxu0
      %v498 = vadd.f32 %v361, %v497
      %499 = vdwg.mxu0
      %v500 = vtanh.pop %v453
      %v501 = vtanh.pop %v456
      %v502 = vtanh.pop %v459
      %v503 = vtanh.pop %v462
      %v504 = vtanh.pop %v465
      %v505 = vtanh.pop %v468
      %v506 = vtanh.pop %v471
      %v507 = vtanh.pop %v474
      %v508 = vtanh.pop %v477
      %v509 = vtanh.pop %v480
      %v510 = vtanh.pop %v483
      %v511 = vtanh.pop %v486
      %v512 = vtanh.pop %v489
      %v513 = vtanh.pop %v492
      %v514 = vtanh.pop %v495
      %v515 = vtanh.pop %v498
      %v516 = vmul.f32 %v500, %v500
      %v517 = vmul.f32 %v501, %v501
      %v518 = vmul.f32 %v502, %v502
      %v519 = vmul.f32 %v503, %v503
      %v520 = vmul.f32 %v504, %v504
      %v521 = vmul.f32 %v505, %v505
      %v522 = vmul.f32 %v506, %v506
      %v523 = vmul.f32 %v507, %v507
      %v524 = vmul.f32 %v508, %v508
      %v525 = vmul.f32 %v509, %v509
      %v526 = vmul.f32 %v510, %v510
      %v527 = vmul.f32 %v511, %v511
      %v528 = vmul.f32 %v512, %v512
      %v529 = vmul.f32 %v513, %v513
      %v530 = vmul.f32 %v514, %v514
      %v531 = vmul.f32 %v515, %v515
      %v532 = vsub.f32 1.0, %v516
      %v533 = vsub.f32 1.0, %v517
      %v534 = vsub.f32 1.0, %v518
      %v535 = vsub.f32 1.0, %v519
      %v536 = vsub.f32 1.0, %v520
      %v537 = vsub.f32 1.0, %v521
      %v538 = vsub.f32 1.0, %v522
      %v539 = vsub.f32 1.0, %v523
      %v540 = vsub.f32 1.0, %v524
      %v541 = vsub.f32 1.0, %v525
      %v542 = vsub.f32 1.0, %v526
      %v543 = vsub.f32 1.0, %v527
      %v544 = vsub.f32 1.0, %v528
      %v545 = vsub.f32 1.0, %v529
      %v546 = vsub.f32 1.0, %v530
      %v547 = vsub.f32 1.0, %v531
      %v548 = vperm.slane %v217, 0
      %v549 = vmul.f32 %v532, %v548
      %v550 = vmul.f32 %v533, %v548
      %v551 = vmul.f32 %v534, %v548
      %v552 = vmul.f32 %v535, %v548
      %v553 = vmul.f32 %v536, %v548
      %v554 = vmul.f32 %v537, %v548
      %v555 = vmul.f32 %v538, %v548
      %v556 = vmul.f32 %v539, %v548
      %v557 = vmul.f32 %v540, %v548
      %v558 = vmul.f32 %v541, %v548
      %v559 = vmul.f32 %v542, %v548
      %v560 = vmul.f32 %v543, %v548
      %v561 = vmul.f32 %v544, %v548
      %v562 = vmul.f32 %v545, %v548
      %v563 = vmul.f32 %v546, %v548
      %v564 = vmul.f32 %v547, %v548
      %v566 = vsel %vm362, %v549, 0
      %v569 = vsel %vm362, %v550, 0
      %v572 = vsel %vm362, %v551, 0
      %v575 = vsel %vm362, %v552, 0
      %v578 = vsel %vm362, %v553, 0
      %v581 = vsel %vm362, %v554, 0
      %v584 = vsel %vm362, %v555, 0
      %v587 = vsel %vm362, %v556, 0
      %v590 = vsel %vm362, %v557, 0
      %v593 = vsel %vm362, %v558, 0
      %v596 = vsel %vm362, %v559, 0
      %v599 = vsel %vm362, %v560, 0
      %v602 = vsel %vm362, %v561, 0
      %v605 = vsel %vm362, %v562, 0
      %v608 = vsel %vm362, %v563, 0
      %v611 = vsel %vm362, %v564, 0
      %613 = vmatpush.msra.mxu0 0.0
      %614 = vmatpush.msra.mxu0 0.0
      %615 = vmatpush.msra.mxu0 0.0
      %616 = vmatpush.msra.mxu0 0.0
      %617 = vmatpush.msra.mxu0 0.0
      %618 = vmatpush.msra.mxu0 0.0
      %619 = vmatpush.msra.mxu0 0.0
      %620 = vmatpush.msra.mxu0 0.0
      %621 = vmatpush.msra.mxu0 %v225
      %622 = vmatpush.msra.mxu0 %v224
      %623 = vmatpush.msra.mxu0 %v223
      %624 = vmatpush.msra.mxu0 %v222
      %625 = vmatpush.msra.mxu0 %v221
      %626 = vmatpush.msra.mxu0 %v220
      %627 = vmatpush.msra.mxu0 %v219
      %628 = vmatpush.msra.mxu0 %v218
      %629 = vmatmul.f32.gmra.mxu0 %v566
      %v630 = vpop.f32.mrf.mxu0
      %v631 = vadd.f32 0.0, %v630
      %632 = vmatmul.f32.gmra.mxu0 %v569
      %v633 = vpop.f32.mrf.mxu0
      %v634 = vadd.f32 0.0, %v633
      %635 = vmatmul.f32.gmra.mxu0 %v572
      %v636 = vpop.f32.mrf.mxu0
      %v637 = vadd.f32 0.0, %v636
      %638 = vmatmul.f32.gmra.mxu0 %v575
      %v639 = vpop.f32.mrf.mxu0
      %v640 = vadd.f32 0.0, %v639
      %641 = vmatmul.f32.gmra.mxu0 %v578
      %v642 = vpop.f32.mrf.mxu0
      %v643 = vadd.f32 0.0, %v642
      %644 = vmatmul.f32.gmra.mxu0 %v581
      %v645 = vpop.f32.mrf.mxu0
      %v646 = vadd.f32 0.0, %v645
      %647 = vmatmul.f32.gmra.mxu0 %v584
      %v648 = vpop.f32.mrf.mxu0
      %v649 = vadd.f32 0.0, %v648
      %650 = vmatmul.f32.gmra.mxu0 %v587
      %v651 = vpop.f32.mrf.mxu0
      %v652 = vadd.f32 0.0, %v651
      %653 = vmatmul.f32.gmra.mxu0 %v590
      %v654 = vpop.f32.mrf.mxu0
      %v655 = vadd.f32 0.0, %v654
      %656 = vmatmul.f32.gmra.mxu0 %v593
      %v657 = vpop.f32.mrf.mxu0
      %v658 = vadd.f32 0.0, %v657
      %659 = vmatmul.f32.gmra.mxu0 %v596
      %v660 = vpop.f32.mrf.mxu0
      %v661 = vadd.f32 0.0, %v660
      %662 = vmatmul.f32.gmra.mxu0 %v599
      %v663 = vpop.f32.mrf.mxu0
      %v664 = vadd.f32 0.0, %v663
      %665 = vmatmul.f32.gmra.mxu0 %v602
      %v666 = vpop.f32.mrf.mxu0
      %v667 = vadd.f32 0.0, %v666
      %668 = vmatmul.f32.gmra.mxu0 %v605
      %v669 = vpop.f32.mrf.mxu0
      %v670 = vadd.f32 0.0, %v669
      %671 = vmatmul.f32.gmra.mxu0 %v608
      %v672 = vpop.f32.mrf.mxu0
      %v673 = vadd.f32 0.0, %v672
      %674 = vmatmul.f32.gmra.mxu0 %v611
      %v675 = vpop.f32.mrf.mxu0
      %v676 = vadd.f32 0.0, %v675
      %677 = vdwg.mxu0
      %v678 = vmul.f32 %v345, %v345
      %v679 = vmul.f32 %v346, %v346
      %v680 = vmul.f32 %v347, %v347
      %v681 = vmul.f32 %v348, %v348
      %v682 = vmul.f32 %v349, %v349
      %v683 = vmul.f32 %v350, %v350
      %v684 = vmul.f32 %v351, %v351
      %v685 = vmul.f32 %v352, %v352
      %v686 = vmul.f32 %v353, %v353
      %v687 = vmul.f32 %v354, %v354
      %v688 = vmul.f32 %v355, %v355
      %v689 = vmul.f32 %v356, %v356
      %v690 = vmul.f32 %v357, %v357
      %v691 = vmul.f32 %v358, %v358
      %v692 = vmul.f32 %v359, %v359
      %v693 = vmul.f32 %v360, %v360
      %v694 = vsub.f32 1.0, %v678
      %v695 = vsub.f32 1.0, %v679
      %v696 = vsub.f32 1.0, %v680
      %v697 = vsub.f32 1.0, %v681
      %v698 = vsub.f32 1.0, %v682
      %v699 = vsub.f32 1.0, %v683
      %v700 = vsub.f32 1.0, %v684
      %v701 = vsub.f32 1.0, %v685
      %v702 = vsub.f32 1.0, %v686
      %v703 = vsub.f32 1.0, %v687
      %v704 = vsub.f32 1.0, %v688
      %v705 = vsub.f32 1.0, %v689
      %v706 = vsub.f32 1.0, %v690
      %v707 = vsub.f32 1.0, %v691
      %v708 = vsub.f32 1.0, %v692
      %v709 = vsub.f32 1.0, %v693
      %v710 = vmul.f32 %v694, %v631
      %v711 = vmul.f32 %v695, %v634
      %v712 = vmul.f32 %v696, %v637
      %v713 = vmul.f32 %v697, %v640
      %v714 = vmul.f32 %v698, %v643
      %v715 = vmul.f32 %v699, %v646
      %v716 = vmul.f32 %v700, %v649
      %v717 = vmul.f32 %v701, %v652
      %v718 = vmul.f32 %v702, %v655
      %v719 = vmul.f32 %v703, %v658
      %v720 = vmul.f32 %v704, %v661
      %v721 = vmul.f32 %v705, %v664
      %v722 = vmul.f32 %v706, %v667
      %v723 = vmul.f32 %v707, %v670
      %v724 = vmul.f32 %v708, %v673
      %v725 = vmul.f32 %v709, %v676
      %v726 = vlaneseq
      %v727 = vand.u32 %v726, 127
      %vm728 = vcmp.lt.s32.totalorder %v727, 32
      %v729 = vsel %vm728, %v710, %v345
      %v730 = vsel %vm728, %v711, %v346
      %v731 = vsel %vm728, %v712, %v347
      %v732 = vsel %vm728, %v713, %v348
      %v733 = vsel %vm728, %v714, %v349
      %v734 = vsel %vm728, %v715, %v350
      %v735 = vsel %vm728, %v716, %v351
      %v736 = vsel %vm728, %v717, %v352
      %v737 = vsel %vm728, %v718, %v353
      %v738 = vsel %vm728, %v719, %v354
      %v739 = vsel %vm728, %v720, %v355
      %v740 = vsel %vm728, %v721, %v356
      %v741 = vsel %vm728, %v722, %v357
      %v742 = vsel %vm728, %v723, %v358
      %v743 = vsel %vm728, %v724, %v359
      %v744 = vsel %vm728, %v725, %v360
      %v745 = vld [vmem:[%s2] sm:$0xff]
      %v746 = vld [vmem:[%s3] sm:$0xff]
      %748 = vset.pattern.permute.xlu0 0
      %749 = vperm.xlu0 %748, %v746
      %v750 = vpop.permute.xlu0 %749
      %v753 = vsel %vm362, %v745, 0
      %v756 = vsel %vm362, %v729, 0
      %v759 = vsel %vm362, %v730, 0
      %v762 = vsel %vm362, %v731, 0
      %v765 = vsel %vm362, %v732, 0
      %v768 = vsel %vm362, %v733, 0
      %v771 = vsel %vm362, %v734, 0
      %v774 = vsel %vm362, %v735, 0
      %v777 = vsel %vm362, %v736, 0
      %v780 = vsel %vm362, %v737, 0
      %v783 = vsel %vm362, %v738, 0
      %v786 = vsel %vm362, %v739, 0
      %v789 = vsel %vm362, %v740, 0
      %v792 = vsel %vm362, %v741, 0
      %v795 = vsel %vm362, %v742, 0
      %v798 = vsel %vm362, %v743, 0
      %v801 = vsel %vm362, %v744, 0
      %803 = vmatpush.xpose.msra.mxu0 %v801
      %804 = vmatpush.xpose.msra.mxu0 %v798
      %805 = vmatpush.xpose.msra.mxu0 %v795
      %806 = vmatpush.xpose.msra.mxu0 %v792
      %807 = vmatpush.xpose.msra.mxu0 %v789
      %808 = vmatpush.xpose.msra.mxu0 %v786
      %809 = vmatpush.xpose.msra.mxu0 %v783
      %810 = vmatpush.xpose.msra.mxu0 %v780
      %811 = vmatpush.xpose.msra.mxu0 %v777
      %812 = vmatpush.xpose.msra.mxu0 %v774
      %813 = vmatpush.xpose.msra.mxu0 %v771
      %814 = vmatpush.xpose.msra.mxu0 %v768
      %815 = vmatpush.xpose.msra.mxu0 %v765
      %816 = vmatpush.xpose.msra.mxu0 %v762
      %817 = vmatpush.xpose.msra.mxu0 %v759
      %818 = vmatpush.xpose.msra.mxu0 %v756
      %819 = vmatmul.f32.gmra.mxu0 %v753
      %v820 = vpop.f32.mrf.mxu0
      %v821 = vadd.f32 %v750, %v820
      %822 = vdwg.mxu0
      %823 = vst [vmem:[%s197] sm:$0xff] %v821
      %p824 = scmp.lt.s32.totalorder %s15, 1
      %s825 = scalar_select %p824, %s15, 1
      %s826 = smul.addr %s825, 8
      %s827 = scalar_lea.vmem %s4, %s826
      // Predicated region
      $region37: #{input_hnn_forward.1} parent=35 // pred_check
        %p828 = pneg %p122
      $region38: #{input_hnn_forward.1} parent=35 // pred_check_branch
        %830 = sbr.rel (%p828) target = $region40
      $region39: #{input_hnn_forward.1} parent=35 // pred_region
        _
      $region40: #{input_hnn_forward.1} parent=35 // pred_fallthru
        _
    $region36: #{input_hnn_forward.1} parent=5 // pred_fallthru
      _
    %p831 = scmp.le.s32.totalorder 2, %s10
    // Predicated region
    $region41: #{input_hnn_forward.1} parent=5 // pred_check
      %p832 = pneg %p831
    $region42: #{input_hnn_forward.1} parent=5 // pred_check_branch
      %834 = sbr.rel (%p832) target = $region44
    $region43: #{input_hnn_forward.1} parent=5 // pred_region
      %s835 = ssub.s32 %s10, 2
      // Predicated region
      $region45: #{input_hnn_forward.1} parent=43 // pred_check
        %p836 = pneg %p128
      $region46: #{input_hnn_forward.1} parent=43 // pred_check_branch
        %838 = sbr.rel (%p836) target = $region48
      $region47: #{input_hnn_forward.1} parent=43 // pred_region
        %p839 = scmp.lt.s32.totalorder %s16, 1
        %s840 = scalar_select %p839, %s16, 1
        %s841 = smul.addr %s840, 8
        %s842 = scalar_lea.vmem %s4, %s841
      $region48: #{input_hnn_forward.1} parent=43 // pred_fallthru
        _
    $region44: #{input_hnn_forward.1} parent=5 // pred_fallthru
      _
  $region6: #{input_hnn_forward.1} parent=0 // loop_footer
    %s14 = sadd.s32 1, %s10
  $region7: #{input_hnn_forward.1} parent=0 // loop_footer_branch
    %9 = sbr.rel target = $region3
  $region8: #{input_hnn_forward.1} parent=0 // loop_exit
    _

</llo_original>
